<compile_context>
chip_gen: v7x
topology: tpu7x:2x2x1
jax: 0.10.0
libtpu: 0.0.40
codegen_flags: <defaults>
</compile_context>

<pallas_src>
import jax
import jax.numpy as jnp
from jax.experimental import pallas as pl
from jax.experimental.pallas import tpu as pltpu


# ----------------------------------------------------------------------------
# Fused kernel: both 2-layer MLP heads + cross-entropy + BCE-with-logits.
# ----------------------------------------------------------------------------
def _markov_loss_kernel(
    z0_ref,        # (N, F)   f32
    z1_ref,        # (N, F)   f32
    labels_ref,    # (N, 1)   i32   action labels
    perm_ref,      # (N, 1)   i32   negative-sample permutation
    w1i_ref, b1i_ref, w2i_ref, b2i_ref,   # inverse model:  (2F,H),(1,H),(H,A),(1,A)
    w1d_ref, b1d_ref, w2d_ref, b2d_ref,   # discriminator:  (2F,H),(1,H),(1,H),(1,1)
    out_ref,       # (1, 1)   f32   SMEM scalar output
):
    n, f = z0_ref.shape
    num_actions = w2i_ref.shape[1]

    z0 = z0_ref[...]
    z1 = z1_ref[...]

    # ---- Inverse model: feature-split first layer, ReLU, small MXU head -----
    h = (
        jnp.dot(z0, w1i_ref[0:f, :], preferred_element_type=jnp.float32)
        + jnp.dot(z1, w1i_ref[f:2 * f, :], preferred_element_type=jnp.float32)
        + b1i_ref[...]
    )
    h = jnp.maximum(h, 0.0)
    logits = jnp.dot(h, w2i_ref[...], preferred_element_type=jnp.float32) + b2i_ref[...]

    # ---- Cross-entropy (mean over batch), stable log-sum-exp -----------------
    m = jnp.max(logits, axis=-1, keepdims=True)
    lse = m + jnp.log(jnp.sum(jnp.exp(logits - m), axis=-1, keepdims=True))
    onehot = (
        jax.lax.broadcasted_iota(jnp.int32, (n, num_actions), 1) == labels_ref[...]
    ).astype(jnp.float32)
    picked = jnp.sum(onehot * logits, axis=-1, keepdims=True)
    l_inverse = jnp.sum(lse - picked) / jnp.float32(n)

    # ---- Discriminator: share z0 contribution across pos/neg halves ----------
    t0 = jnp.dot(z0, w1d_ref[0:f, :], preferred_element_type=jnp.float32)      # (N, H)
    t1 = jnp.dot(z1, w1d_ref[f:2 * f, :], preferred_element_type=jnp.float32)  # (N, H)

    # Permutation applied in hidden space (exact): rows of t1 re-ordered by a
    # one-hot matmul built from the prefetched perm indices.
    pmat = (
        jax.lax.broadcasted_iota(jnp.int32, (n, n), 1) == perm_ref[...]
    ).astype(jnp.float32)
    t1_neg = jnp.dot(pmat, t1, preferred_element_type=jnp.float32)             # (N, H)

    hd_pos = jnp.maximum(t0 + t1 + b1d_ref[...], 0.0)
    hd_neg = jnp.maximum(t0 + t1_neg + b1d_ref[...], 0.0)

    # Second layer (H -> 1) on the VPU: broadcast multiply + lane reduce.
    w2d_row = w2d_ref[...]                                                     # (1, H)
    x_pos = jnp.sum(hd_pos * w2d_row, axis=-1, keepdims=True) + b2d_ref[...]   # (N, 1)
    x_neg = jnp.sum(hd_neg * w2d_row, axis=-1, keepdims=True) + b2d_ref[...]   # (N, 1)

    # ---- BCE with logits: target = 1 for pos half, 0 for neg half ------------
    bce_pos = jnp.maximum(x_pos, 0.0) - x_pos + jnp.log1p(jnp.exp(-jnp.abs(x_pos)))
    bce_neg = jnp.maximum(x_neg, 0.0) + jnp.log1p(jnp.exp(-jnp.abs(x_neg)))
    l_ratio = (jnp.sum(bce_pos) + jnp.sum(bce_neg)) / jnp.float32(2 * n)

    out_ref[0, 0] = l_inverse + l_ratio


# ----------------------------------------------------------------------------
# Parameter init (deterministic, PyTorch-Linear-style uniform fan-in init).
# ----------------------------------------------------------------------------
def init_markov_head_params(key, feature_size, hidden_size, num_actions):
    def linear(key, fan_in, fan_out):
        k_w, k_b = jax.random.split(key)
        bound = 1.0 / jnp.sqrt(jnp.float32(fan_in))
        w = jax.random.uniform(k_w, (fan_in, fan_out), jnp.float32, -bound, bound)
        b = jax.random.uniform(k_b, (1, fan_out), jnp.float32, -bound, bound)
        return w, b

    k1, k2, k3, k4 = jax.random.split(key, 4)
    w1i, b1i = linear(k1, feature_size * 2, hidden_size)   # inverse model L1
    w2i, b2i = linear(k2, hidden_size, num_actions)        # inverse model L2
    w1d, b1d = linear(k3, feature_size * 2, hidden_size)   # discriminator L1
    w2d_col, b2d = linear(k4, hidden_size, 1)              # discriminator L2
    w2d = w2d_col.T                                        # stored as (1, H) row for the VPU path
    return (w1i, b1i, w2i, b2i, w1d, b1d, w2d, b2d)


# ----------------------------------------------------------------------------
# MarkovHead.compute_markov_loss wrapper — no concat / gather glue HLOs.
# ----------------------------------------------------------------------------
@jax.jit
def compute_markov_loss(params, z0, z1, a, perm):
    n = z0.shape[0]
    labels = a.astype(jnp.int32).reshape(n, 1)
    perm2d = perm.astype(jnp.int32).reshape(n, 1)
    (w1i, b1i, w2i, b2i, w1d, b1d, w2d, b2d) = params
    args = (z0, z1, labels, perm2d, w1i, b1i, w2i, b2i, w1d, b1d, w2d, b2d)

    vmem = pl.BlockSpec(memory_space=pltpu.MemorySpace.VMEM)
    smem = pl.BlockSpec(memory_space=pltpu.MemorySpace.SMEM)

    out = pl.pallas_call(
        _markov_loss_kernel,
        out_shape=jax.ShapeDtypeStruct((1, 1), jnp.float32),
        in_specs=[vmem] * len(args),
        out_specs=smem,
    )(*args)
    return out[0, 0]


# ----------------------------------------------------------------------------
# Pure-JAX reference (mirrors the torch module) for a correctness self-check.
# ----------------------------------------------------------------------------
def compute_markov_loss_ref(params, z0, z1, a, perm):
    (w1i, b1i, w2i, b2i, w1d, b1d, w2d, b2d) = params
    n = z0.shape[0]

    ctx_inv = jnp.concatenate([z0, z1], axis=-1)
    logits = jnp.maximum(ctx_inv @ w1i + b1i, 0.0) @ w2i + b2i
    logp = jax.nn.log_softmax(logits, axis=-1)
    l_inverse = -jnp.mean(jnp.take_along_axis(logp, a.reshape(n, 1).astype(jnp.int32), axis=-1))

    z1_neg = z1[perm]
    ctx_disc = jnp.concatenate(
        [jnp.concatenate([z0, z0], axis=0), jnp.concatenate([z1, z1_neg], axis=0)],
        axis=-1,
    )
    x = jnp.maximum(ctx_disc @ w1d + b1d, 0.0) @ w2d.T + b2d      # w2d stored as (1, H)
    t = jnp.concatenate([jnp.ones((n, 1)), jnp.zeros((n, 1))], axis=0)
    l_ratio = jnp.mean(jnp.maximum(x, 0.0) - x * t + jnp.log1p(jnp.exp(-jnp.abs(x))))
    return l_inverse + l_ratio


if __name__ == "__main__":
    # Small shapes consistent with the module.
    N, FEATURE, HIDDEN, ACTIONS = 8, 16, 32, 4

    key = jax.random.PRNGKey(0)
    k_params, k_z0, k_z1, k_a, k_perm = jax.random.split(key, 5)

    params = init_markov_head_params(k_params, FEATURE, HIDDEN, ACTIONS)
    z0 = jax.random.normal(k_z0, (N, FEATURE), jnp.float32)
    z1 = jax.random.normal(k_z1, (N, FEATURE), jnp.float32)
    a = jax.random.randint(k_a, (N,), 0, ACTIONS, jnp.int32)
    # torch.randperm equivalent (drawn outside the networks, no grad).
    perm = jax.random.permutation(k_perm, N)

    loss = jax.block_until_ready(compute_markov_loss(params, z0, z1, a, perm))
    loss_ref = jax.block_until_ready(compute_markov_loss_ref(params, z0, z1, a, perm))

    assert jnp.isfinite(loss), "loss is not finite"
    assert jnp.allclose(loss, loss_ref, rtol=1e-5, atol=1e-5), (loss, loss_ref)
    print("KERNEL_OK")
</pallas_src>

<mosaic_0001>
module attributes {stable_mosaic.version = 11 : i64} {
  func.func @_markov_loss_kernel(%arg0: memref<8x16xf32, #tpu.memory_space<vmem>>, %arg1: memref<8x16xf32, #tpu.memory_space<vmem>>, %arg2: memref<8x1xi32, #tpu.memory_space<vmem>>, %arg3: memref<8x1xi32, #tpu.memory_space<vmem>>, %arg4: memref<32x32xf32, #tpu.memory_space<vmem>>, %arg5: memref<1x32xf32, #tpu.memory_space<vmem>>, %arg6: memref<32x4xf32, #tpu.memory_space<vmem>>, %arg7: memref<1x4xf32, #tpu.memory_space<vmem>>, %arg8: memref<32x32xf32, #tpu.memory_space<vmem>>, %arg9: memref<1x32xf32, #tpu.memory_space<vmem>>, %arg10: memref<1x32xf32, #tpu.memory_space<vmem>>, %arg11: memref<1x1xf32, #tpu.memory_space<vmem>>, %arg12: memref<1x1xf32, #tpu.memory_space<smem>>) attributes {dimension_semantics = [], scalar_prefetch = 0 : i64, scratch_operands = 0 : i64, tpu.core_type = #tpu.core_type<tc>} {
    %c0 = arith.constant 0 : index
    %c0_0 = arith.constant 0 : index
    %0 = vector.load %arg0[%c0, %c0_0] : memref<8x16xf32, #tpu.memory_space<vmem>>, vector<8x16xf32>
    %c0_1 = arith.constant 0 : index
    %c0_2 = arith.constant 0 : index
    %1 = vector.load %arg1[%c0_1, %c0_2] : memref<8x16xf32, #tpu.memory_space<vmem>>, vector<8x16xf32>
    %c0_3 = arith.constant 0 : index
    %c0_4 = arith.constant 0 : index
    %2 = vector.load %arg4[%c0_3, %c0_4] : memref<32x32xf32, #tpu.memory_space<vmem>>, vector<16x32xf32>
    %cst = arith.constant dense<0.000000e+00> : vector<8x32xf32>
    %3 = tpu.matmul %0, %2, %cst {dimension_numbers = #tpu.dot_dimension_numbers<[1], [0], [0], [1], [0, 0, 1, 1], [], []>} : vector<8x16xf32>, vector<16x32xf32>, vector<8x32xf32> -> vector<8x32xf32>
    %c16 = arith.constant 16 : index
    %c0_5 = arith.constant 0 : index
    %4 = vector.load %arg4[%c16, %c0_5] : memref<32x32xf32, #tpu.memory_space<vmem>>, vector<16x32xf32>
    %cst_6 = arith.constant dense<0.000000e+00> : vector<8x32xf32>
    %5 = tpu.matmul %1, %4, %cst_6 {dimension_numbers = #tpu.dot_dimension_numbers<[1], [0], [0], [1], [0, 0, 1, 1], [], []>} : vector<8x16xf32>, vector<16x32xf32>, vector<8x32xf32> -> vector<8x32xf32>
    %6 = arith.addf %3, %5 : vector<8x32xf32>
    %c0_7 = arith.constant 0 : index
    %c0_8 = arith.constant 0 : index
    %7 = vector.load %arg5[%c0_7, %c0_8] : memref<1x32xf32, #tpu.memory_space<vmem>>, vector<1x32xf32>
    %8 = vector.broadcast %7 : vector<1x32xf32> to vector<8x32xf32>
    %9 = arith.addf %6, %8 : vector<8x32xf32>
    %cst_9 = arith.constant 0.000000e+00 : f32
    %10 = vector.broadcast %cst_9 : f32 to vector<8x32xf32>
    %11 = arith.maximumf %9, %10 : vector<8x32xf32>
    %c0_10 = arith.constant 0 : index
    %c0_11 = arith.constant 0 : index
    %12 = vector.load %arg6[%c0_10, %c0_11] : memref<32x4xf32, #tpu.memory_space<vmem>>, vector<32x4xf32>
    %cst_12 = arith.constant dense<0.000000e+00> : vector<8x4xf32>
    %13 = tpu.matmul %11, %12, %cst_12 {dimension_numbers = #tpu.dot_dimension_numbers<[1], [0], [0], [1], [0, 0, 1, 1], [], []>} : vector<8x32xf32>, vector<32x4xf32>, vector<8x4xf32> -> vector<8x4xf32>
    %c0_13 = arith.constant 0 : index
    %c0_14 = arith.constant 0 : index
    %14 = vector.load %arg7[%c0_13, %c0_14] : memref<1x4xf32, #tpu.memory_space<vmem>>, vector<1x4xf32>
    %15 = vector.broadcast %14 : vector<1x4xf32> to vector<8x4xf32>
    %16 = arith.addf %13, %15 : vector<8x4xf32>
    %cst_15 = arith.constant dense<0xFF800000> : vector<8xf32>
    %17 = vector.multi_reduction <maximumf>, %16, %cst_15 [1] : vector<8x4xf32> to vector<8xf32>
    %18 = vector.shape_cast %17 : vector<8xf32> to vector<8x1xf32>
    %19 = vector.broadcast %18 : vector<8x1xf32> to vector<8x4xf32>
    %20 = arith.subf %16, %19 : vector<8x4xf32>
    %21 = math.exp %20 : vector<8x4xf32>
    %cst_16 = arith.constant dense<0.000000e+00> : vector<8xf32>
    %22 = vector.multi_reduction <add>, %21, %cst_16 [1] : vector<8x4xf32> to vector<8xf32>
    %23 = vector.shape_cast %22 : vector<8xf32> to vector<8x1xf32>
    %24 = math.log %23 : vector<8x1xf32>
    %25 = arith.addf %18, %24 : vector<8x1xf32>
    %26 = tpu.iota {dimensions = array<i32: 1>} : vector<8x4xi32>
    %c0_17 = arith.constant 0 : index
    %c0_18 = arith.constant 0 : index
    %27 = vector.load %arg2[%c0_17, %c0_18] : memref<8x1xi32, #tpu.memory_space<vmem>>, vector<8x1xi32>
    %28 = vector.broadcast %27 : vector<8x1xi32> to vector<8x4xi32>
    %29 = arith.cmpi eq, %26, %28 : vector<8x4xi32>
    %30 = arith.extui %29 : vector<8x4xi1> to vector<8x4xi32>
    %31 = arith.sitofp %30 : vector<8x4xi32> to vector<8x4xf32>
    %32 = arith.mulf %31, %16 : vector<8x4xf32>
    %cst_19 = arith.constant dense<0.000000e+00> : vector<8xf32>
    %33 = vector.multi_reduction <add>, %32, %cst_19 [1] : vector<8x4xf32> to vector<8xf32>
    %34 = vector.shape_cast %33 : vector<8xf32> to vector<8x1xf32>
    %35 = arith.subf %25, %34 : vector<8x1xf32>
    %36 = vector.shape_cast %35 : vector<8x1xf32> to vector<1x8x1xf32>
    %cst_20 = arith.constant dense<0.000000e+00> : vector<1xf32>
    %37 = vector.multi_reduction <add>, %36, %cst_20 [1, 2] : vector<1x8x1xf32> to vector<1xf32>
    %38 = vector.shape_cast %37 : vector<1xf32> to vector<1x1x1xf32>
    %39 = vector.extract %38[0, 0, 0] : f32 from vector<1x1x1xf32>
    %cst_21 = arith.constant 8.000000e+00 : f32
    %40 = arith.divf %39, %cst_21 : f32
    %c0_22 = arith.constant 0 : index
    %c0_23 = arith.constant 0 : index
    %41 = vector.load %arg8[%c0_22, %c0_23] : memref<32x32xf32, #tpu.memory_space<vmem>>, vector<16x32xf32>
    %cst_24 = arith.constant dense<0.000000e+00> : vector<8x32xf32>
    %42 = tpu.matmul %0, %41, %cst_24 {dimension_numbers = #tpu.dot_dimension_numbers<[1], [0], [0], [1], [0, 0, 1, 1], [], []>} : vector<8x16xf32>, vector<16x32xf32>, vector<8x32xf32> -> vector<8x32xf32>
    %c16_25 = arith.constant 16 : index
    %c0_26 = arith.constant 0 : index
    %43 = vector.load %arg8[%c16_25, %c0_26] : memref<32x32xf32, #tpu.memory_space<vmem>>, vector<16x32xf32>
    %cst_27 = arith.constant dense<0.000000e+00> : vector<8x32xf32>
    %44 = tpu.matmul %1, %43, %cst_27 {dimension_numbers = #tpu.dot_dimension_numbers<[1], [0], [0], [1], [0, 0, 1, 1], [], []>} : vector<8x16xf32>, vector<16x32xf32>, vector<8x32xf32> -> vector<8x32xf32>
    %45 = tpu.iota {dimensions = array<i32: 1>} : vector<8x8xi32>
    %c0_28 = arith.constant 0 : index
    %c0_29 = arith.constant 0 : index
    %46 = vector.load %arg3[%c0_28, %c0_29] : memref<8x1xi32, #tpu.memory_space<vmem>>, vector<8x1xi32>
    %47 = vector.broadcast %46 : vector<8x1xi32> to vector<8x8xi32>
    %48 = arith.cmpi eq, %45, %47 : vector<8x8xi32>
    %49 = arith.extui %48 : vector<8x8xi1> to vector<8x8xi32>
    %50 = arith.sitofp %49 : vector<8x8xi32> to vector<8x8xf32>
    %cst_30 = arith.constant dense<0.000000e+00> : vector<8x32xf32>
    %51 = tpu.matmul %50, %44, %cst_30 {dimension_numbers = #tpu.dot_dimension_numbers<[1], [0], [0], [1], [0, 0, 1, 1], [], []>} : vector<8x8xf32>, vector<8x32xf32>, vector<8x32xf32> -> vector<8x32xf32>
    %52 = arith.addf %42, %44 : vector<8x32xf32>
    %c0_31 = arith.constant 0 : index
    %c0_32 = arith.constant 0 : index
    %53 = vector.load %arg9[%c0_31, %c0_32] : memref<1x32xf32, #tpu.memory_space<vmem>>, vector<1x32xf32>
    %54 = vector.broadcast %53 : vector<1x32xf32> to vector<8x32xf32>
    %55 = arith.addf %52, %54 : vector<8x32xf32>
    %cst_33 = arith.constant 0.000000e+00 : f32
    %56 = vector.broadcast %cst_33 : f32 to vector<8x32xf32>
    %57 = arith.maximumf %55, %56 : vector<8x32xf32>
    %58 = arith.addf %42, %51 : vector<8x32xf32>
    %c0_34 = arith.constant 0 : index
    %c0_35 = arith.constant 0 : index
    %59 = vector.load %arg9[%c0_34, %c0_35] : memref<1x32xf32, #tpu.memory_space<vmem>>, vector<1x32xf32>
    %60 = vector.broadcast %59 : vector<1x32xf32> to vector<8x32xf32>
    %61 = arith.addf %58, %60 : vector<8x32xf32>
    %cst_36 = arith.constant 0.000000e+00 : f32
    %62 = vector.broadcast %cst_36 : f32 to vector<8x32xf32>
    %63 = arith.maximumf %61, %62 : vector<8x32xf32>
    %c0_37 = arith.constant 0 : index
    %c0_38 = arith.constant 0 : index
    %64 = vector.load %arg10[%c0_37, %c0_38] : memref<1x32xf32, #tpu.memory_space<vmem>>, vector<1x32xf32>
    %65 = vector.broadcast %64 : vector<1x32xf32> to vector<8x32xf32>
    %66 = arith.mulf %57, %65 : vector<8x32xf32>
    %cst_39 = arith.constant dense<0.000000e+00> : vector<8xf32>
    %67 = vector.multi_reduction <add>, %66, %cst_39 [1] : vector<8x32xf32> to vector<8xf32>
    %68 = vector.shape_cast %67 : vector<8xf32> to vector<8x1xf32>
    %c0_40 = arith.constant 0 : index
    %c0_41 = arith.constant 0 : index
    %69 = vector.load %arg11[%c0_40, %c0_41] : memref<1x1xf32, #tpu.memory_space<vmem>>, vector<1x1xf32>
    %70 = vector.broadcast %69 : vector<1x1xf32> to vector<8x1xf32>
    %71 = arith.addf %68, %70 : vector<8x1xf32>
    %72 = vector.broadcast %64 : vector<1x32xf32> to vector<8x32xf32>
    %73 = arith.mulf %63, %72 : vector<8x32xf32>
    %cst_42 = arith.constant dense<0.000000e+00> : vector<8xf32>
    %74 = vector.multi_reduction <add>, %73, %cst_42 [1] : vector<8x32xf32> to vector<8xf32>
    %75 = vector.shape_cast %74 : vector<8xf32> to vector<8x1xf32>
    %c0_43 = arith.constant 0 : index
    %c0_44 = arith.constant 0 : index
    %76 = vector.load %arg11[%c0_43, %c0_44] : memref<1x1xf32, #tpu.memory_space<vmem>>, vector<1x1xf32>
    %77 = vector.broadcast %76 : vector<1x1xf32> to vector<8x1xf32>
    %78 = arith.addf %75, %77 : vector<8x1xf32>
    %cst_45 = arith.constant 0.000000e+00 : f32
    %79 = vector.broadcast %cst_45 : f32 to vector<8x1xf32>
    %80 = arith.maximumf %71, %79 : vector<8x1xf32>
    %81 = arith.subf %80, %71 : vector<8x1xf32>
    %82 = math.absf %71 : vector<8x1xf32>
    %cst_46 = arith.constant 0.000000e+00 : f32
    %83 = vector.broadcast %cst_46 : f32 to vector<8x1xf32>
    %84 = arith.subf %83, %82 : vector<8x1xf32>
    %85 = math.exp %84 : vector<8x1xf32>
    %86 = math.log1p %85 : vector<8x1xf32>
    %87 = arith.addf %81, %86 : vector<8x1xf32>
    %cst_47 = arith.constant 0.000000e+00 : f32
    %88 = vector.broadcast %cst_47 : f32 to vector<8x1xf32>
    %89 = arith.maximumf %78, %88 : vector<8x1xf32>
    %90 = math.absf %78 : vector<8x1xf32>
    %cst_48 = arith.constant 0.000000e+00 : f32
    %91 = vector.broadcast %cst_48 : f32 to vector<8x1xf32>
    %92 = arith.subf %91, %90 : vector<8x1xf32>
    %93 = math.exp %92 : vector<8x1xf32>
    %94 = math.log1p %93 : vector<8x1xf32>
    %95 = arith.addf %89, %94 : vector<8x1xf32>
    %96 = vector.shape_cast %87 : vector<8x1xf32> to vector<1x8x1xf32>
    %cst_49 = arith.constant dense<0.000000e+00> : vector<1xf32>
    %97 = vector.multi_reduction <add>, %96, %cst_49 [1, 2] : vector<1x8x1xf32> to vector<1xf32>
    %98 = vector.shape_cast %97 : vector<1xf32> to vector<1x1x1xf32>
    %99 = vector.extract %98[0, 0, 0] : f32 from vector<1x1x1xf32>
    %100 = vector.shape_cast %95 : vector<8x1xf32> to vector<1x8x1xf32>
    %cst_50 = arith.constant dense<0.000000e+00> : vector<1xf32>
    %101 = vector.multi_reduction <add>, %100, %cst_50 [1, 2] : vector<1x8x1xf32> to vector<1xf32>
    %102 = vector.shape_cast %101 : vector<1xf32> to vector<1x1x1xf32>
    %103 = vector.extract %102[0, 0, 0] : f32 from vector<1x1x1xf32>
    %104 = arith.addf %99, %103 : f32
    %cst_51 = arith.constant 1.600000e+01 : f32
    %105 = arith.divf %104, %cst_51 : f32
    %106 = arith.addf %40, %105 : f32
    %c0_52 = arith.constant 0 : index
    %c0_53 = arith.constant 0 : index
    %107 = memref.load %arg12[%c0_52, %c0_53] : memref<1x1xf32, #tpu.memory_space<smem>>
    memref.store %106, %arg12[%c0_52, %c0_53] : memref<1x1xf32, #tpu.memory_space<smem>>
    return
  }
}

</mosaic_0001>

<llo_original>
// kernel: compute_markov_loss.1
$region0: #{compute_markov_loss.1}
  #allocation0 [shape = 'u32[]', space=smem, size = 0x4, offset = 0x4, fixed_abs, tag = 'smem constant byte address 0x4 - core index']
  #allocation1 [shape = 'u32[144,128]{1,0:T(1,128)}', space=vmem, size = 0x12000, scoped, tag = 'internal scratch']
  #allocation2 [shape = 'f32[1,1]{1,0:T(1,128)S(1)}', space=vmem, size = 0x200, scoped, tag = 'scoped memory for compute_markov_loss.1']
  %s0 = inlined_call_operand.vmem [shape: f32[8,16], index: 0, kind: input, shape index: {}]
  %s1 = inlined_call_operand.vmem [shape: f32[8,16], index: 1, kind: input, shape index: {}]
  %s2 = inlined_call_operand.vmem [shape: s32[8,1], index: 2, kind: input, shape index: {}]
  %s3 = inlined_call_operand.vmem [shape: s32[8,1], index: 3, kind: input, shape index: {}]
  %s4 = inlined_call_operand.vmem [shape: f32[32,32], index: 4, kind: input, shape index: {}]
  %s5 = inlined_call_operand.hbm [shape: f32[1,32], index: 5, kind: input, shape index: {}]
  %s6 = inlined_call_operand.vmem [shape: f32[32,4], index: 6, kind: input, shape index: {}]
  %s7 = inlined_call_operand.hbm [shape: f32[1,4], index: 7, kind: input, shape index: {}]
  %s8 = inlined_call_operand.vmem [shape: f32[32,32], index: 8, kind: input, shape index: {}]
  %s9 = inlined_call_operand.vmem [shape: f32[1,32], index: 9, kind: input, shape index: {}]
  %s10 = inlined_call_operand.vmem [shape: f32[1,32], index: 10, kind: input, shape index: {}]
  %s11 = inlined_call_operand.<no memory space> [shape: f32[1,1], index: 11, kind: input, shape index: {}]
  %s12 = inlined_call_operand.hbm [shape: f32[1,1], index: 12, kind: output, shape index: {}]
  %s13 = sld [smem:[#allocation0]]
  $region66: #{compute_markov_loss.1} parent=0
    _
  %s15 = ssub.s32 1, %s13
  %s16 = scalar_select 0, %s15, %s13
  %v17 = vstv %s11
  %18 = vst [vmem:[#allocation2] sm:$0x1] %v17
  $region1: #{compute_markov_loss.1} parent=0
    #allocation3 [shape = 'u8[512]{0}', space=vmem, size = 0x400, scoped, tag = 'input window, operand 5, single buffered']
    #allocation4 [shape = 's32[1]{0}', space=sflag, size = 0x4, scoped, tag = 'scoped memory for compute_markov_loss.1']
    #allocation5 [shape = 's32[1]{0}', space=sflag, size = 0x4, scoped, tag = 'scoped memory for compute_markov_loss.1']
    #allocation6 [shape = 'u8[512]{0}', space=vmem, size = 0x400, scoped, tag = 'input window, operand 7, single buffered']
    #allocation7 [shape = 's32[1]{0}', space=sflag, size = 0x4, scoped, tag = 'scoped memory for compute_markov_loss.1']
    #allocation8 [shape = 'u8[512]{0}', space=smem, size = 0x200, scoped, tag = 'output window, operand 0, single buffered']
    %19 = vsyncpa [#allocation4], 0
    %20 = vsyncpa [#allocation7], 0
    %21 = vsyncpa [#allocation5], 0
    // Predicated region
    $region2: #{compute_markov_loss.1} parent=1 // pred_check
      _
    $region3: #{compute_markov_loss.1} parent=1 // pred_check_branch
      %23 = sbr.rel (0) target = $region5
    $region4: #{compute_markov_loss.1} parent=1 // pred_region
      _
    $region5: #{compute_markov_loss.1} parent=1 // pred_fallthru
      _
    // Predicated region
    $region6: #{compute_markov_loss.1} parent=1 // pred_check
      _
    $region7: #{compute_markov_loss.1} parent=1 // pred_check_branch
      %25 = sbr.rel (0) target = $region9
    $region8: #{compute_markov_loss.1} parent=1 // pred_region
      _
    $region9: #{compute_markov_loss.1} parent=1 // pred_fallthru
      _
    // Predicated region
    $region10: #{compute_markov_loss.1} parent=1 // pred_check
      _
    $region11: #{compute_markov_loss.1} parent=1 // pred_check_branch
      %27 = sbr.rel (0) target = $region13
    $region12: #{compute_markov_loss.1} parent=1 // pred_region
      _
    $region13: #{compute_markov_loss.1} parent=1 // pred_fallthru
      _
    // Predicated region
    $region14: #{compute_markov_loss.1} parent=1 // pred_check
      _
    $region15: #{compute_markov_loss.1} parent=1 // pred_check_branch
      %29 = sbr.rel (0) target = $region17
    $region16: #{compute_markov_loss.1} parent=1 // pred_region
      _
    $region17: #{compute_markov_loss.1} parent=1 // pred_fallthru
      _
    // Predicated region
    $region18: #{compute_markov_loss.1} parent=1 // pred_check
      _
    $region19: #{compute_markov_loss.1} parent=1 // pred_check_branch
      %31 = sbr.rel (0) target = $region21
    $region20: #{compute_markov_loss.1} parent=1 // pred_region
      _
    $region21: #{compute_markov_loss.1} parent=1 // pred_fallthru
      _
    // Predicated region
    $region22: #{compute_markov_loss.1} parent=1 // pred_check
      _
    $region23: #{compute_markov_loss.1} parent=1 // pred_check_branch
      %33 = sbr.rel (0) target = $region25
    $region24: #{compute_markov_loss.1} parent=1 // pred_region
      %s35 = ssub.s32 16, 16
      %36 = vsyncadd [#allocation4], %s35
      %s38 = sshll.u32 [#allocation3], 4
      %s39 = int_to_ptr.vmem [resolvable:$true] %s38
      %41 = dma.hbm_to_vmem [thread:$0]  %s5, 16, %s39, [#allocation4]
    $region25: #{compute_markov_loss.1} parent=1 // pred_fallthru
      _
    // Predicated region
    $region26: #{compute_markov_loss.1} parent=1 // pred_check
      _
    $region27: #{compute_markov_loss.1} parent=1 // pred_check_branch
      %43 = sbr.rel (0) target = $region29
    $region28: #{compute_markov_loss.1} parent=1 // pred_region
      _
    $region29: #{compute_markov_loss.1} parent=1 // pred_fallthru
      _
    // Predicated region
    $region30: #{compute_markov_loss.1} parent=1 // pred_check
      _
    $region31: #{compute_markov_loss.1} parent=1 // pred_check_branch
      %45 = sbr.rel (0) target = $region33
    $region32: #{compute_markov_loss.1} parent=1 // pred_region
      %s47 = ssub.s32 16, 16
      %48 = vsyncadd [#allocation7], %s47
      %s50 = sshll.u32 [#allocation6], 4
      %s51 = int_to_ptr.vmem [resolvable:$true] %s50
      %53 = dma.hbm_to_vmem [thread:$0]  %s7, 16, %s51, [#allocation7]
    $region33: #{compute_markov_loss.1} parent=1 // pred_fallthru
      _
    // Predicated region
    $region34: #{compute_markov_loss.1} parent=1 // pred_check
      _
    $region35: #{compute_markov_loss.1} parent=1 // pred_check_branch
      %55 = sbr.rel (0) target = $region37
    $region36: #{compute_markov_loss.1} parent=1 // pred_region
      _
    $region37: #{compute_markov_loss.1} parent=1 // pred_fallthru
      _
    // Predicated region
    $region38: #{compute_markov_loss.1} parent=1 // pred_check
      _
    $region39: #{compute_markov_loss.1} parent=1 // pred_check_branch
      %57 = sbr.rel (0) target = $region41
    $region40: #{compute_markov_loss.1} parent=1 // pred_region
      _
    $region41: #{compute_markov_loss.1} parent=1 // pred_fallthru
      _
    // Predicated region
    $region42: #{compute_markov_loss.1} parent=1 // pred_check
      _
    $region43: #{compute_markov_loss.1} parent=1 // pred_check_branch
      %59 = sbr.rel (0) target = $region45
    $region44: #{compute_markov_loss.1} parent=1 // pred_region
      _
    $region45: #{compute_markov_loss.1} parent=1 // pred_fallthru
      _
    // Predicated region
    $region46: #{compute_markov_loss.1} parent=1 // pred_check
      _
    $region47: #{compute_markov_loss.1} parent=1 // pred_check_branch
      %61 = sbr.rel (0) target = $region49
    $region48: #{compute_markov_loss.1} parent=1 // pred_region
      _
    $region49: #{compute_markov_loss.1} parent=1 // pred_fallthru
      _
    // Predicated region
    $region50: #{compute_markov_loss.1} parent=1 // pred_check
      _
    $region51: #{compute_markov_loss.1} parent=1 // pred_check_branch
      %63 = sbr.rel (0) target = $region53
    $region52: #{compute_markov_loss.1} parent=1 // pred_region
      %64 = dma.done [#allocation4], 16
    $region53: #{compute_markov_loss.1} parent=1 // pred_fallthru
      _
    // Predicated region
    $region54: #{compute_markov_loss.1} parent=1 // pred_check
      _
    $region55: #{compute_markov_loss.1} parent=1 // pred_check_branch
      %66 = sbr.rel (0) target = $region57
    $region56: #{compute_markov_loss.1} parent=1 // pred_region
      %67 = dma.done [#allocation7], 16
    $region57: #{compute_markov_loss.1} parent=1 // pred_fallthru
      _
    %v68 = vld [vmem:[%s0] sm:$0xff]
    %v69 = vld [vmem:[%s1] sm:$0xff]
    %v70 = vld [vmem:[%s4] sm:$0xff]
    %v71 = vld [vmem:[%s4 + $0x8] sm:$0xff]
    %v72 = vld [vmem:[%s4 + $0x10] sm:$0xff]
    %v73 = vld [vmem:[%s4 + $0x18] sm:$0xff]
    %vm74 = vcmask 130048
    %v76 = vsel %vm74, %v69, 0
    %78 = vmatprep.subr.mxu0 0.0
    %79 = vmatpush1.msra.mxu0 %v72
    %80 = vmatprep.subr.mxu0 0.0
    %81 = vmatpush1.msra.mxu0 %v73
    %82 = vmatprep.subr.mxu0 0.0
    %83 = vmatpush1.msra.mxu0 0.0
    %84 = vmatprep.subr.mxu0 0.0
    %85 = vmatpush1.msra.mxu0 0.0
    %86 = vmatprep.subr.mxu0 0.0
    %87 = vmatpush1.msra.mxu0 0.0
    %88 = vmatprep.subr.mxu0 0.0
    %89 = vmatpush1.msra.mxu0 0.0
    %90 = vmatprep.subr.mxu0 0.0
    %91 = vmatpush1.msra.mxu0 0.0
    %92 = vmatprep.subr.mxu0 0.0
    %93 = vmatpush1.msra.mxu0 0.0
    %94 = vmatprep.subr.mxu0 0.0
    %95 = vmatpush1.msra.mxu0 0.0
    %96 = vmatprep.subr.mxu0 0.0
    %97 = vmatpush1.msra.mxu0 0.0
    %98 = vmatprep.subr.mxu0 0.0
    %99 = vmatpush1.msra.mxu0 0.0
    %100 = vmatprep.subr.mxu0 0.0
    %101 = vmatpush1.msra.mxu0 0.0
    %102 = vmatprep.subr.mxu0 0.0
    %103 = vmatpush1.msra.mxu0 0.0
    %104 = vmatprep.subr.mxu0 0.0
    %105 = vmatpush1.msra.mxu0 0.0
    %106 = vmatprep.subr.mxu0 0.0
    %107 = vmatpush1.msra.mxu0 0.0
    %108 = vmatprep.subr.mxu0 0.0
    %109 = vmatpush1.msra.mxu0 0.0
    %110 = vmatprep.subr.mxu0 0.0
    %111 = vmatpush1.msra.mxu0 0.0
    %112 = vmatprep.subr.mxu0 0.0
    %113 = vmatpush1.msra.mxu0 0.0
    %114 = vmatprep.subr.mxu0 0.0
    %115 = vmatpush1.msra.mxu0 0.0
    %116 = vmatprep.subr.mxu0 0.0
    %117 = vmatpush1.msra.mxu0 0.0
    %118 = vmatprep.subr.mxu0 0.0
    %119 = vmatpush1.msra.mxu0 0.0
    %120 = vmatprep.subr.mxu0 0.0
    %121 = vmatpush1.msra.mxu0 0.0
    %122 = vmatprep.subr.mxu0 0.0
    %123 = vmatpush1.msra.mxu0 0.0
    %124 = vmatprep.subr.mxu0 0.0
    %125 = vmatpush1.msra.mxu0 0.0
    %126 = vmatprep.subr.mxu0 0.0
    %127 = vmatpush1.msra.mxu0 0.0
    %128 = vmatprep.subr.mxu0 0.0
    %129 = vmatpush1.msra.mxu0 0.0
    %130 = vmatprep.subr.mxu0 0.0
    %131 = vmatpush1.msra.mxu0 0.0
    %132 = vmatprep.subr.mxu0 0.0
    %133 = vmatpush1.msra.mxu0 0.0
    %134 = vmatprep.subr.mxu0 0.0
    %135 = vmatpush1.msra.mxu0 0.0
    %136 = vmatprep.subr.mxu0 0.0
    %137 = vmatpush1.msra.mxu0 0.0
    %138 = vmatprep.subr.mxu0 0.0
    %139 = vmatpush1.msra.mxu0 0.0
    %140 = vmatprep.subr.mxu0 0.0
    %141 = vmatpush1.msra.mxu0 0.0
    %142 = vmatprep.mubr.f32.mxu0 0.0
    %143 = vmatmul.mubr.f32.gmra.mrb[0].mxu0 %v76
    %v144 = vpop.f32.mrb[0].mxu0
    %v145 = vadd.f32 0.0, %v144
    %v146 = vpop.f32.mrb[0].mxu0
    %147 = vdwg.mxu0
    %v149 = vsel %vm74, %v68, 0
    %151 = vmatprep.subr.mxu0 0.0
    %152 = vmatpush1.msra.mxu0 %v70
    %153 = vmatprep.subr.mxu0 0.0
    %154 = vmatpush1.msra.mxu0 %v71
    %155 = vmatprep.subr.mxu0 0.0
    %156 = vmatpush1.msra.mxu0 0.0
    %157 = vmatprep.subr.mxu0 0.0
    %158 = vmatpush1.msra.mxu0 0.0
    %159 = vmatprep.subr.mxu0 0.0
    %160 = vmatpush1.msra.mxu0 0.0
    %161 = vmatprep.subr.mxu0 0.0
    %162 = vmatpush1.msra.mxu0 0.0
    %163 = vmatprep.subr.mxu0 0.0
    %164 = vmatpush1.msra.mxu0 0.0
    %165 = vmatprep.subr.mxu0 0.0
    %166 = vmatpush1.msra.mxu0 0.0
    %167 = vmatprep.subr.mxu0 0.0
    %168 = vmatpush1.msra.mxu0 0.0
    %169 = vmatprep.subr.mxu0 0.0
    %170 = vmatpush1.msra.mxu0 0.0
    %171 = vmatprep.subr.mxu0 0.0
    %172 = vmatpush1.msra.mxu0 0.0
    %173 = vmatprep.subr.mxu0 0.0
    %174 = vmatpush1.msra.mxu0 0.0
    %175 = vmatprep.subr.mxu0 0.0
    %176 = vmatpush1.msra.mxu0 0.0
    %177 = vmatprep.subr.mxu0 0.0
    %178 = vmatpush1.msra.mxu0 0.0
    %179 = vmatprep.subr.mxu0 0.0
    %180 = vmatpush1.msra.mxu0 0.0
    %181 = vmatprep.subr.mxu0 0.0
    %182 = vmatpush1.msra.mxu0 0.0
    %183 = vmatprep.subr.mxu0 0.0
    %184 = vmatpush1.msra.mxu0 0.0
    %185 = vmatprep.subr.mxu0 0.0
    %186 = vmatpush1.msra.mxu0 0.0
    %187 = vmatprep.subr.mxu0 0.0
    %188 = vmatpush1.msra.mxu0 0.0
    %189 = vmatprep.subr.mxu0 0.0
    %190 = vmatpush1.msra.mxu0 0.0
    %191 = vmatprep.subr.mxu0 0.0
    %192 = vmatpush1.msra.mxu0 0.0
    %193 = vmatprep.subr.mxu0 0.0
    %194 = vmatpush1.msra.mxu0 0.0
    %195 = vmatprep.subr.mxu0 0.0
    %196 = vmatpush1.msra.mxu0 0.0
    %197 = vmatprep.subr.mxu0 0.0
    %198 = vmatpush1.msra.mxu0 0.0
    %199 = vmatprep.subr.mxu0 0.0
    %200 = vmatpush1.msra.mxu0 0.0
    %201 = vmatprep.subr.mxu0 0.0
    %202 = vmatpush1.msra.mxu0 0.0
    %203 = vmatprep.subr.mxu0 0.0
    %204 = vmatpush1.msra.mxu0 0.0
    %205 = vmatprep.subr.mxu0 0.0
    %206 = vmatpush1.msra.mxu0 0.0
    %207 = vmatprep.subr.mxu0 0.0
    %208 = vmatpush1.msra.mxu0 0.0
    %209 = vmatprep.subr.mxu0 0.0
    %210 = vmatpush1.msra.mxu0 0.0
    %211 = vmatprep.subr.mxu0 0.0
    %212 = vmatpush1.msra.mxu0 0.0
    %213 = vmatprep.subr.mxu0 0.0
    %214 = vmatpush1.msra.mxu0 0.0
    %215 = vmatprep.mubr.f32.mxu0 0.0
    %216 = vmatmul.mubr.f32.gmra.mrb[0].mxu0 %v149
    %v217 = vpop.f32.mrb[0].mxu0
    %v218 = vadd.f32 %v145, %v217
    %v219 = vpop.f32.mrb[0].mxu0
    %220 = vdwg.mxu0
    %v221 = vld [vmem:[#allocation3] sm:$0x1]
    %v223 = vlaneseq
    %v224 = vshrl.u32 %v223, 7
    %v225 = vsub.s32 0, %v224
    %v226 = vrot.slane %v221, %v225
    %v228 = vadd.f32 %v218, %v226
    %v229 = vmax.f32 %v228, 0.0
    %v230 = vld [vmem:[%s6] sm:$0xff]
    %v231 = vld [vmem:[%s6 + $0x8] sm:$0xff]
    %v232 = vld [vmem:[%s6 + $0x10] sm:$0xff]
    %v233 = vld [vmem:[%s6 + $0x18] sm:$0xff]
    %v234 = vld [vmem:[#allocation6] sm:$0x1]
    %v236 = vlaneseq
    %v237 = vshrl.u32 %v236, 7
    %v238 = vsub.s32 0, %v237
    %v239 = vrot.slane %v234, %v238
    %vm241 = vcmask 261120
    %v243 = vsel %vm241, %v229, 0
    %245 = vmatprep.subr.mxu0 0.0
    %246 = vmatpush1.msra.mxu0 %v230
    %247 = vmatprep.subr.mxu0 0.0
    %248 = vmatpush1.msra.mxu0 %v231
    %249 = vmatprep.subr.mxu0 0.0
    %250 = vmatpush1.msra.mxu0 %v232
    %251 = vmatprep.subr.mxu0 0.0
    %252 = vmatpush1.msra.mxu0 %v233
    %253 = vmatprep.subr.mxu0 0.0
    %254 = vmatpush1.msra.mxu0 0.0
    %255 = vmatprep.subr.mxu0 0.0
    %256 = vmatpush1.msra.mxu0 0.0
    %257 = vmatprep.subr.mxu0 0.0
    %258 = vmatpush1.msra.mxu0 0.0
    %259 = vmatprep.subr.mxu0 0.0
    %260 = vmatpush1.msra.mxu0 0.0
    %261 = vmatprep.subr.mxu0 0.0
    %262 = vmatpush1.msra.mxu0 0.0
    %263 = vmatprep.subr.mxu0 0.0
    %264 = vmatpush1.msra.mxu0 0.0
    %265 = vmatprep.subr.mxu0 0.0
    %266 = vmatpush1.msra.mxu0 0.0
    %267 = vmatprep.subr.mxu0 0.0
    %268 = vmatpush1.msra.mxu0 0.0
    %269 = vmatprep.subr.mxu0 0.0
    %270 = vmatpush1.msra.mxu0 0.0
    %271 = vmatprep.subr.mxu0 0.0
    %272 = vmatpush1.msra.mxu0 0.0
    %273 = vmatprep.subr.mxu0 0.0
    %274 = vmatpush1.msra.mxu0 0.0
    %275 = vmatprep.subr.mxu0 0.0
    %276 = vmatpush1.msra.mxu0 0.0
    %277 = vmatprep.subr.mxu0 0.0
    %278 = vmatpush1.msra.mxu0 0.0
    %279 = vmatprep.subr.mxu0 0.0
    %280 = vmatpush1.msra.mxu0 0.0
    %281 = vmatprep.subr.mxu0 0.0
    %282 = vmatpush1.msra.mxu0 0.0
    %283 = vmatprep.subr.mxu0 0.0
    %284 = vmatpush1.msra.mxu0 0.0
    %285 = vmatprep.subr.mxu0 0.0
    %286 = vmatpush1.msra.mxu0 0.0
    %287 = vmatprep.subr.mxu0 0.0
    %288 = vmatpush1.msra.mxu0 0.0
    %289 = vmatprep.subr.mxu0 0.0
    %290 = vmatpush1.msra.mxu0 0.0
    %291 = vmatprep.subr.mxu0 0.0
    %292 = vmatpush1.msra.mxu0 0.0
    %293 = vmatprep.subr.mxu0 0.0
    %294 = vmatpush1.msra.mxu0 0.0
    %295 = vmatprep.subr.mxu0 0.0
    %296 = vmatpush1.msra.mxu0 0.0
    %297 = vmatprep.subr.mxu0 0.0
    %298 = vmatpush1.msra.mxu0 0.0
    %299 = vmatprep.subr.mxu0 0.0
    %300 = vmatpush1.msra.mxu0 0.0
    %301 = vmatprep.subr.mxu0 0.0
    %302 = vmatpush1.msra.mxu0 0.0
    %303 = vmatprep.subr.mxu0 0.0
    %304 = vmatpush1.msra.mxu0 0.0
    %305 = vmatprep.subr.mxu0 0.0
    %306 = vmatpush1.msra.mxu0 0.0
    %307 = vmatprep.subr.mxu0 0.0
    %308 = vmatpush1.msra.mxu0 0.0
    %309 = vmatprep.mubr.f32.mxu0 0.0
    %310 = vmatmul.mubr.f32.gmra.mrb[0].mxu0 %v243
    %v311 = vpop.f32.mrb[0].mxu0
    %v312 = vadd.f32 %v239, %v311
    %v313 = vpop.f32.mrb[0].mxu0
    %314 = vdwg.mxu0
    %vm315 = vcmask 31744
    %v316 = vsel %vm315, %v312, -inf
    %317 = vmax.xlane.f32.xlu0 %v316
    %v318 = vpop.xlane.xlu0 %317
    %v319 = vsub.f32 %v312, %v318
    %v320 = vmul.f32 %v319, 1.442695
    %v321 = vpow.pop %v320
    %v322 = vsel %vm315, %v321, 0.0
    %323 = vadd.xlane.f32.xlu0 %v322
    %v324 = vpop.xlane.xlu0 %323
    %v325 = vlog2.pop %v324
    %v326 = vmul.f32 %v325, 0.6931472
    %v327 = vadd.f32 %v318, %v326
    %v328 = vlaneseq
    %v329 = vand.u32 %v328, 127
    %v330 = vld [vmem:[%s2] sm:$0xff]
    %331 = vset.pattern.permute.xlu0 0
    %332 = vperm.xlu0 %331, %v330
    %v333 = vpop.permute.xlu0 %332
    %vm334 = vcmp.eq.s32.totalorder %v329, %v333
    %v335 = vsel %vm334, 1, 0
    %v336 = vcvt.s32.f32 %v335
    %v337 = vmul.f32 %v336, %v312
    %v338 = vsel %vm315, %v337, 0.0
    %339 = vadd.xlane.f32.xlu0 %v338
    %v340 = vpop.xlane.xlu0 %339
    %v341 = vsub.f32 %v327, %v340
    %vm342 = vcmask 7168
    %v343 = vsel %vm342, %v341, 0.0
    %344 = vadd.xlane.f32.xlu0 %v343
    %v345 = vpop.xlane.xlu0 %344
    %v346 = vrot.slane %v345, 4
    %v347 = vadd.f32 %v345, %v346
    %v348 = vrot.slane %v347, 2
    %v349 = vadd.f32 %v347, %v348
    %v350 = vrot.slane %v349, 1
    %v351 = vadd.f32 %v349, %v350
    %s352 = vtos %v351
    %v353 = vrcp.pop 8.0
    %s354 = vtos %v353
    %s355 = smul.f32 %s352, %s354
    %v356 = vld [vmem:[%s8] sm:$0xff]
    %v357 = vld [vmem:[%s8 + $0x8] sm:$0xff]
    %358 = vmatprep.subr.mxu0 0.0
    %359 = vmatpush1.msra.mxu0 %v356
    %360 = vmatprep.subr.mxu0 0.0
    %361 = vmatpush1.msra.mxu0 %v357
    %362 = vmatprep.subr.mxu0 0.0
    %363 = vmatpush1.msra.mxu0 0.0
    %364 = vmatprep.subr.mxu0 0.0
    %365 = vmatpush1.msra.mxu0 0.0
    %366 = vmatprep.subr.mxu0 0.0
    %367 = vmatpush1.msra.mxu0 0.0
    %368 = vmatprep.subr.mxu0 0.0
    %369 = vmatpush1.msra.mxu0 0.0
    %370 = vmatprep.subr.mxu0 0.0
    %371 = vmatpush1.msra.mxu0 0.0
    %372 = vmatprep.subr.mxu0 0.0
    %373 = vmatpush1.msra.mxu0 0.0
    %374 = vmatprep.subr.mxu0 0.0
    %375 = vmatpush1.msra.mxu0 0.0
    %376 = vmatprep.subr.mxu0 0.0
    %377 = vmatpush1.msra.mxu0 0.0
    %378 = vmatprep.subr.mxu0 0.0
    %379 = vmatpush1.msra.mxu0 0.0
    %380 = vmatprep.subr.mxu0 0.0
    %381 = vmatpush1.msra.mxu0 0.0
    %382 = vmatprep.subr.mxu0 0.0
    %383 = vmatpush1.msra.mxu0 0.0
    %384 = vmatprep.subr.mxu0 0.0
    %385 = vmatpush1.msra.mxu0 0.0
    %386 = vmatprep.subr.mxu0 0.0
    %387 = vmatpush1.msra.mxu0 0.0
    %388 = vmatprep.subr.mxu0 0.0
    %389 = vmatpush1.msra.mxu0 0.0
    %390 = vmatprep.subr.mxu0 0.0
    %391 = vmatpush1.msra.mxu0 0.0
    %392 = vmatprep.subr.mxu0 0.0
    %393 = vmatpush1.msra.mxu0 0.0
    %394 = vmatprep.subr.mxu0 0.0
    %395 = vmatpush1.msra.mxu0 0.0
    %396 = vmatprep.subr.mxu0 0.0
    %397 = vmatpush1.msra.mxu0 0.0
    %398 = vmatprep.subr.mxu0 0.0
    %399 = vmatpush1.msra.mxu0 0.0
    %400 = vmatprep.subr.mxu0 0.0
    %401 = vmatpush1.msra.mxu0 0.0
    %402 = vmatprep.subr.mxu0 0.0
    %403 = vmatpush1.msra.mxu0 0.0
    %404 = vmatprep.subr.mxu0 0.0
    %405 = vmatpush1.msra.mxu0 0.0
    %406 = vmatprep.subr.mxu0 0.0
    %407 = vmatpush1.msra.mxu0 0.0
    %408 = vmatprep.subr.mxu0 0.0
    %409 = vmatpush1.msra.mxu0 0.0
    %410 = vmatprep.subr.mxu0 0.0
    %411 = vmatpush1.msra.mxu0 0.0
    %412 = vmatprep.subr.mxu0 0.0
    %413 = vmatpush1.msra.mxu0 0.0
    %414 = vmatprep.subr.mxu0 0.0
    %415 = vmatpush1.msra.mxu0 0.0
    %416 = vmatprep.subr.mxu0 0.0
    %417 = vmatpush1.msra.mxu0 0.0
    %418 = vmatprep.subr.mxu0 0.0
    %419 = vmatpush1.msra.mxu0 0.0
    %420 = vmatprep.subr.mxu0 0.0
    %421 = vmatpush1.msra.mxu0 0.0
    %422 = vmatprep.mubr.f32.mxu0 0.0
    %423 = vmatmul.mubr.f32.gmra.mrb[0].mxu0 %v149
    %v424 = vpop.f32.mrb[0].mxu0
    %v425 = vadd.f32 0.0, %v424
    %v426 = vpop.f32.mrb[0].mxu0
    %427 = vdwg.mxu0
    %v428 = vld [vmem:[%s8 + $0x10] sm:$0xff]
    %v429 = vld [vmem:[%s8 + $0x18] sm:$0xff]
    %430 = vmatprep.subr.mxu0 0.0
    %431 = vmatpush1.msra.mxu0 %v428
    %432 = vmatprep.subr.mxu0 0.0
    %433 = vmatpush1.msra.mxu0 %v429
    %434 = vmatprep.subr.mxu0 0.0
    %435 = vmatpush1.msra.mxu0 0.0
    %436 = vmatprep.subr.mxu0 0.0
    %437 = vmatpush1.msra.mxu0 0.0
    %438 = vmatprep.subr.mxu0 0.0
    %439 = vmatpush1.msra.mxu0 0.0
    %440 = vmatprep.subr.mxu0 0.0
    %441 = vmatpush1.msra.mxu0 0.0
    %442 = vmatprep.subr.mxu0 0.0
    %443 = vmatpush1.msra.mxu0 0.0
    %444 = vmatprep.subr.mxu0 0.0
    %445 = vmatpush1.msra.mxu0 0.0
    %446 = vmatprep.subr.mxu0 0.0
    %447 = vmatpush1.msra.mxu0 0.0
    %448 = vmatprep.subr.mxu0 0.0
    %449 = vmatpush1.msra.mxu0 0.0
    %450 = vmatprep.subr.mxu0 0.0
    %451 = vmatpush1.msra.mxu0 0.0
    %452 = vmatprep.subr.mxu0 0.0
    %453 = vmatpush1.msra.mxu0 0.0
    %454 = vmatprep.subr.mxu0 0.0
    %455 = vmatpush1.msra.mxu0 0.0
    %456 = vmatprep.subr.mxu0 0.0
    %457 = vmatpush1.msra.mxu0 0.0
    %458 = vmatprep.subr.mxu0 0.0
    %459 = vmatpush1.msra.mxu0 0.0
    %460 = vmatprep.subr.mxu0 0.0
    %461 = vmatpush1.msra.mxu0 0.0
    %462 = vmatprep.subr.mxu0 0.0
    %463 = vmatpush1.msra.mxu0 0.0
    %464 = vmatprep.subr.mxu0 0.0
    %465 = vmatpush1.msra.mxu0 0.0
    %466 = vmatprep.subr.mxu0 0.0
    %467 = vmatpush1.msra.mxu0 0.0
    %468 = vmatprep.subr.mxu0 0.0
    %469 = vmatpush1.msra.mxu0 0.0
    %470 = vmatprep.subr.mxu0 0.0
    %471 = vmatpush1.msra.mxu0 0.0
    %472 = vmatprep.subr.mxu0 0.0
    %473 = vmatpush1.msra.mxu0 0.0
    %474 = vmatprep.subr.mxu0 0.0
    %475 = vmatpush1.msra.mxu0 0.0
    %476 = vmatprep.subr.mxu0 0.0
    %477 = vmatpush1.msra.mxu0 0.0
    %478 = vmatprep.subr.mxu0 0.0
    %479 = vmatpush1.msra.mxu0 0.0
    %480 = vmatprep.subr.mxu0 0.0
    %481 = vmatpush1.msra.mxu0 0.0
    %482 = vmatprep.subr.mxu0 0.0
    %483 = vmatpush1.msra.mxu0 0.0
    %484 = vmatprep.subr.mxu0 0.0
    %485 = vmatpush1.msra.mxu0 0.0
    %486 = vmatprep.subr.mxu0 0.0
    %487 = vmatpush1.msra.mxu0 0.0
    %488 = vmatprep.subr.mxu0 0.0
    %489 = vmatpush1.msra.mxu0 0.0
    %490 = vmatprep.subr.mxu0 0.0
    %491 = vmatpush1.msra.mxu0 0.0
    %492 = vmatprep.subr.mxu0 0.0
    %493 = vmatpush1.msra.mxu0 0.0
    %494 = vmatprep.mubr.f32.mxu0 0.0
    %495 = vmatmul.mubr.f32.gmra.mrb[0].mxu0 %v76
    %v496 = vpop.f32.mrb[0].mxu0
    %v497 = vadd.f32 0.0, %v496
    %v498 = vpop.f32.mrb[0].mxu0
    %499 = vdwg.mxu0
    %v500 = vld [vmem:[%s3] sm:$0xff]
    %501 = vset.pattern.permute.xlu0 0
    %502 = vperm.xlu0 %501, %v500
    %v503 = vpop.permute.xlu0 %502
    %vm504 = vcmp.eq.s32.totalorder %v329, %v503
    %v505 = vsel %vm504, 1, 0
    %v506 = vcvt.s32.f32 %v505
    %vm507 = vcmask 64512
    %v509 = vsel %vm507, %v506, 0
    %511 = vmatprep.subr.mxu0 0.0
    %512 = vmatpush1.msra.mxu0 %v497
    %513 = vmatprep.subr.mxu0 0.0
    %514 = vmatpush1.msra.mxu0 0.0
    %515 = vmatprep.subr.mxu0 0.0
    %516 = vmatpush1.msra.mxu0 0.0
    %517 = vmatprep.subr.mxu0 0.0
    %518 = vmatpush1.msra.mxu0 0.0
    %519 = vmatprep.subr.mxu0 0.0
    %520 = vmatpush1.msra.mxu0 0.0
    %521 = vmatprep.subr.mxu0 0.0
    %522 = vmatpush1.msra.mxu0 0.0
    %523 = vmatprep.subr.mxu0 0.0
    %524 = vmatpush1.msra.mxu0 0.0
    %525 = vmatprep.subr.mxu0 0.0
    %526 = vmatpush1.msra.mxu0 0.0
    %527 = vmatprep.subr.mxu0 0.0
    %528 = vmatpush1.msra.mxu0 0.0
    %529 = vmatprep.subr.mxu0 0.0
    %530 = vmatpush1.msra.mxu0 0.0
    %531 = vmatprep.subr.mxu0 0.0
    %532 = vmatpush1.msra.mxu0 0.0
    %533 = vmatprep.subr.mxu0 0.0
    %534 = vmatpush1.msra.mxu0 0.0
    %535 = vmatprep.subr.mxu0 0.0
    %536 = vmatpush1.msra.mxu0 0.0
    %537 = vmatprep.subr.mxu0 0.0
    %538 = vmatpush1.msra.mxu0 0.0
    %539 = vmatprep.subr.mxu0 0.0
    %540 = vmatpush1.msra.mxu0 0.0
    %541 = vmatprep.subr.mxu0 0.0
    %542 = vmatpush1.msra.mxu0 0.0
    %543 = vmatprep.subr.mxu0 0.0
    %544 = vmatpush1.msra.mxu0 0.0
    %545 = vmatprep.subr.mxu0 0.0
    %546 = vmatpush1.msra.mxu0 0.0
    %547 = vmatprep.subr.mxu0 0.0
    %548 = vmatpush1.msra.mxu0 0.0
    %549 = vmatprep.subr.mxu0 0.0
    %550 = vmatpush1.msra.mxu0 0.0
    %551 = vmatprep.subr.mxu0 0.0
    %552 = vmatpush1.msra.mxu0 0.0
    %553 = vmatprep.subr.mxu0 0.0
    %554 = vmatpush1.msra.mxu0 0.0
    %555 = vmatprep.subr.mxu0 0.0
    %556 = vmatpush1.msra.mxu0 0.0
    %557 = vmatprep.subr.mxu0 0.0
    %558 = vmatpush1.msra.mxu0 0.0
    %559 = vmatprep.subr.mxu0 0.0
    %560 = vmatpush1.msra.mxu0 0.0
    %561 = vmatprep.subr.mxu0 0.0
    %562 = vmatpush1.msra.mxu0 0.0
    %563 = vmatprep.subr.mxu0 0.0
    %564 = vmatpush1.msra.mxu0 0.0
    %565 = vmatprep.subr.mxu0 0.0
    %566 = vmatpush1.msra.mxu0 0.0
    %567 = vmatprep.subr.mxu0 0.0
    %568 = vmatpush1.msra.mxu0 0.0
    %569 = vmatprep.subr.mxu0 0.0
    %570 = vmatpush1.msra.mxu0 0.0
    %571 = vmatprep.subr.mxu0 0.0
    %572 = vmatpush1.msra.mxu0 0.0
    %573 = vmatprep.subr.mxu0 0.0
    %574 = vmatpush1.msra.mxu0 0.0
    %575 = vmatprep.mubr.f32.mxu0 0.0
    %576 = vmatmul.mubr.f32.gmra.mrb[0].mxu0 %v509
    %v577 = vpop.f32.mrb[0].mxu0
    %v578 = vadd.f32 0.0, %v577
    %v579 = vpop.f32.mrb[0].mxu0
    %580 = vdwg.mxu0
    %v581 = vadd.f32 %v425, %v497
    %v582 = vld [vmem:[%s9] sm:$0x1]
    %v584 = vlaneseq
    %v585 = vshrl.u32 %v584, 7
    %v586 = vsub.s32 0, %v585
    %v587 = vrot.slane %v582, %v586
    %v589 = vadd.f32 %v581, %v587
    %v590 = vmax.f32 %v589, 0.0
    %v591 = vadd.f32 %v425, %v578
    %v592 = vadd.f32 %v591, %v587
    %v593 = vmax.f32 %v592, 0.0
    %v594 = vld [vmem:[%s10] sm:$0x1]
    %v596 = vlaneseq
    %v597 = vshrl.u32 %v596, 7
    %v598 = vsub.s32 0, %v597
    %v599 = vrot.slane %v594, %v598
    %v601 = vmul.f32 %v590, %v599
    %v602 = vsel %vm241, %v601, 0.0
    %603 = vadd.xlane.f32.xlu0 %v602
    %v604 = vpop.xlane.xlu0 %603
    %v605 = vld [vmem:[#allocation2] sm:$0x1]
    %v607 = vlaneseq
    %v608 = vshrl.u32 %v607, 7
    %v609 = vsub.s32 0, %v608
    %v610 = vrot.slane %v605, %v609
    %v612 = vadd.f32 %v604, %v610
    %v613 = vmul.f32 %v593, %v599
    %v614 = vsel %vm241, %v613, 0.0
    %615 = vadd.xlane.f32.xlu0 %v614
    %v616 = vpop.xlane.xlu0 %615
    %v617 = vadd.f32 %v616, %v610
    %v618 = vmax.f32 %v612, 0.0
    %v619 = vsub.f32 %v618, %v612
    %v620 = vand.u32 2147483647, %v612
    %v621 = vsub.f32 0.0, %v620
    %v622 = vmul.f32 %v621, 1.442695
    %v623 = vpow.pop %v622
    %v624 = vadd.f32 %v623, 1.0
    %v625 = vlog2.pop %v624
    %v626 = vmul.f32 %v625, 0.6931472
    %v627 = vmul.f32 -0.5, %v623
    %v628 = vadd.f32 %v627, 1.0
    %v629 = vmul.f32 %v628, %v623
    %v630 = vand.u32 2147483647, %v623
    %vm631 = vcmp.lt.f32.partialorder %v630, 0.0004427343
    %v632 = vsel %vm631, %v629, %v626
    %v633 = vadd.f32 %v619, %v632
    %v634 = vmax.f32 %v617, 0.0
    %v635 = vand.u32 2147483647, %v617
    %v636 = vsub.f32 0.0, %v635
    %v637 = vmul.f32 %v636, 1.442695
    %v638 = vpow.pop %v637
    %v639 = vadd.f32 %v638, 1.0
    %v640 = vlog2.pop %v639
    %v641 = vmul.f32 %v640, 0.6931472
    %v642 = vmul.f32 -0.5, %v638
    %v643 = vadd.f32 %v642, 1.0
    %v644 = vmul.f32 %v643, %v638
    %v645 = vand.u32 2147483647, %v638
    %vm646 = vcmp.lt.f32.partialorder %v645, 0.0004427343
    %v647 = vsel %vm646, %v644, %v641
    %v648 = vadd.f32 %v634, %v647
    %v649 = vsel %vm342, %v633, 0.0
    %650 = vadd.xlane.f32.xlu0 %v649
    %v651 = vpop.xlane.xlu0 %650
    %v652 = vrot.slane %v651, 4
    %v653 = vadd.f32 %v651, %v652
    %v654 = vrot.slane %v653, 2
    %v655 = vadd.f32 %v653, %v654
    %v656 = vrot.slane %v655, 1
    %v657 = vadd.f32 %v655, %v656
    %s658 = vtos %v657
    %v659 = vsel %vm342, %v648, 0.0
    %660 = vadd.xlane.f32.xlu0 %v659
    %v661 = vpop.xlane.xlu0 %660
    %v662 = vrot.slane %v661, 4
    %v663 = vadd.f32 %v661, %v662
    %v664 = vrot.slane %v663, 2
    %v665 = vadd.f32 %v663, %v664
    %v666 = vrot.slane %v665, 1
    %v667 = vadd.f32 %v665, %v666
    %s668 = vtos %v667
    %s669 = sadd.f32 %s658, %s668
    %v670 = vrcp.pop 16.0
    %s671 = vtos %v670
    %s672 = smul.f32 %s669, %s671
    %s673 = sadd.f32 %s355, %s672
    %s674 = scalar_lea.smem [#allocation8], 0
    %675 = sst [smem:[%s674]] %s673
    // Predicated region
    $region58: #{compute_markov_loss.1} parent=1 // pred_check
      _
    $region59: #{compute_markov_loss.1} parent=1 // pred_check_branch
      %677 = sbr.rel (0) target = $region61
    $region60: #{compute_markov_loss.1} parent=1 // pred_region
      %s679 = ssub.s32 16, 16
      %680 = vsyncadd [#allocation5], %s679
      %683 = dma.smem_to_hbm [#allocation8], 16, %s12, [#allocation5]
    $region61: #{compute_markov_loss.1} parent=1 // pred_fallthru
      _
    // Predicated region
    $region62: #{compute_markov_loss.1} parent=1 // pred_check
      _
    $region63: #{compute_markov_loss.1} parent=1 // pred_check_branch
      %685 = sbr.rel (0) target = $region65
    $region64: #{compute_markov_loss.1} parent=1 // pred_region
      %686 = dma.done [#allocation5], 16
    $region65: #{compute_markov_loss.1} parent=1 // pred_fallthru
      _
    %687 = sfence
    %688 = vsyncpa [#allocation4], 1
    %689 = vsyncpa [#allocation7], 1
    %690 = vsyncpa [#allocation5], 1

</llo_original>
